<compile_context>
chip_gen: v6e
topology: v6e:2x2x1
jax: 0.10.0
libtpu: 0.0.40
codegen_flags: <defaults>
</compile_context>

<pallas_src>
import functools

import jax
import jax.numpy as jnp
from jax.experimental import pallas as pl
from jax.experimental.pallas import tpu as pltpu

_LANE = 128


def _mass_loss_kernel(x_ref, y_ref, loss_ref, *, rows, block_rows, scale,
                      mask_last):
    """Accumulate sum((y - x)^2) over the grid; scale by weight/N at the end."""
    i = pl.program_id(0)
    last = pl.num_programs(0) - 1

    @pl.when(i == 0)
    def _init():
        loss_ref[...] = jnp.zeros_like(loss_ref)

    diff = y_ref[...].astype(jnp.float32) - x_ref[...].astype(jnp.float32)
    sq = diff * diff

    if mask_last:
        # Only the final (partial) row-block needs masking; its out-of-bounds
        # rows contain undefined data.  Mask with the *global* row index.
        @pl.when(i == last)
        def _partial_block():
            row = jax.lax.broadcasted_iota(jnp.int32, sq.shape, dimension=0)
            valid = (i * block_rows + row) < rows
            loss_ref[...] = loss_ref[...] + jnp.sum(jnp.where(valid, sq, 0.0))

        @pl.when(i != last)
        def _full_block():
            loss_ref[...] = loss_ref[...] + jnp.sum(sq)
    else:
        loss_ref[...] = loss_ref[...] + jnp.sum(sq)

    @pl.when(i == last)
    def _finalize():
        loss_ref[...] = loss_ref[...] * jnp.float32(scale)


def mass_conservation_loss(input_mass, output_mass, weight=0.2, *,
                           block_rows=2048):
    """JAX/Pallas equivalent of MassConservationLoss.forward.

    Args:
      input_mass:  (N,) array (f32 or bf16).
      output_mass: (N,) array, same shape/dtype as input_mass.
      weight: Python float loss weight.
      block_rows: rows (of 128 lanes) per grid tile; multiple of 8.

    Returns:
      Scalar float32 loss = weight * mean((output_mass - input_mass)**2).
    """
    assert input_mass.shape == output_mass.shape
    assert input_mass.ndim == 1
    n = input_mass.shape[0]
    assert n >= 1

    rows = pl.cdiv(n, _LANE)
    n_padded = rows * _LANE

    x, y = input_mass, output_mass
    if n_padded != n:
        # Zero-pad only the <=127-element lane tail (zeros contribute 0).
        pad = n_padded - n
        x = jnp.pad(x, (0, pad))
        y = jnp.pad(y, (0, pad))
    x = x.reshape(rows, _LANE)
    y = y.reshape(rows, _LANE)

    # A single block covering the full array is exempt from the sublane rule;
    # otherwise block_rows must be a multiple of 8.
    br = rows if rows <= block_rows else block_rows
    if br != rows:
        assert br % 8 == 0, "block_rows must be a multiple of 8"
    num_blocks = pl.cdiv(rows, br)
    mask_last = (rows % br) != 0

    kernel = functools.partial(
        _mass_loss_kernel,
        rows=rows,
        block_rows=br,
        scale=float(weight) / float(n),
        mask_last=mask_last,
    )

    loss = pl.pallas_call(
        kernel,
        out_shape=jax.ShapeDtypeStruct((1, 1), jnp.float32),
        grid_spec=pltpu.PrefetchScalarGridSpec(
            num_scalar_prefetch=0,
            grid=(num_blocks,),
            in_specs=[
                pl.BlockSpec((br, _LANE), lambda i: (i, 0)),
                pl.BlockSpec((br, _LANE), lambda i: (i, 0)),
            ],
            out_specs=pl.BlockSpec((1, 1), lambda i: (0, 0)),
        ),
        compiler_params=pltpu.CompilerParams(
            dimension_semantics=("arbitrary",),
        ),
    )(x, y)

    return loss[0, 0]


if __name__ == "__main__":
    key = jax.random.PRNGKey(0)
    k1, k2, k3, k4 = jax.random.split(key, 4)

    # Case 1: batch of 8 total-mass scalars (matches the PyTorch usage).
    n1 = 8
    in1 = jax.random.normal(k1, (n1,), dtype=jnp.float32) * 10.0
    out1 = in1 + 0.1 * jax.random.normal(k2, (n1,), dtype=jnp.float32)
    loss1 = jax.block_until_ready(mass_conservation_loss(in1, out1, weight=0.2))
    ref1 = 0.2 * jnp.mean((out1 - in1) ** 2)
    assert jnp.allclose(loss1, ref1, rtol=1e-5, atol=1e-6), (loss1, ref1)

    # Case 2: non-multiple-of-128 length with a small block_rows so the grid,
    # lane-tail zero-padding and partial-row-block masking paths all run.
    n2 = 3109
    in2 = jax.random.normal(k3, (n2,), dtype=jnp.float32)
    out2 = in2 + 0.05 * jax.random.normal(k4, (n2,), dtype=jnp.float32)
    loss2 = jax.block_until_ready(
        mass_conservation_loss(in2, out2, weight=0.2, block_rows=8))
    ref2 = 0.2 * jnp.mean((out2 - in2) ** 2)
    assert jnp.allclose(loss2, ref2, rtol=1e-5, atol=1e-6), (loss2, ref2)

    print("KERNEL_OK")
</pallas_src>

<mosaic_0001>
module attributes {stable_mosaic.version = 11 : i64} {
  func.func @_mass_loss_kernel(%arg0: i32, %arg1: memref<1x128xf32, #tpu.memory_space<vmem>>, %arg2: memref<1x128xf32, #tpu.memory_space<vmem>>, %arg3: memref<1x1xf32, #tpu.memory_space<vmem>>) attributes {dimension_semantics = [#tpu.dimension_semantics<arbitrary>], iteration_bounds = array<i64: 1>, scalar_prefetch = 0 : i64, scratch_operands = 0 : i64, tpu.core_type = #tpu.core_type<tc>, window_params = [{transform_indices = @transform_0, window_bounds = array<i64: 1, 128>}, {transform_indices = @transform_1, window_bounds = array<i64: 1, 128>}, {pipeline_mode = #tpu.pipeline_mode<synchronous>, transform_indices = @transform_2, window_bounds = array<i64: 1, 1>}]} {
    %c0_i32 = arith.constant 0 : i32
    %0 = arith.cmpi eq, %arg0, %c0_i32 : i32
    %1 = arith.extui %0 : i1 to i32
    %c0_i32_0 = arith.constant 0 : i32
    %2 = arith.cmpi ne, %1, %c0_i32_0 : i32
    scf.if %2 {
      %cst_10 = arith.constant 0.000000e+00 : f32
      %18 = vector.broadcast %cst_10 : f32 to vector<1x1xf32>
      %c0_11 = arith.constant 0 : index
      %c0_12 = arith.constant 0 : index
      %19 = vector.load %arg3[%c0_11, %c0_12] : memref<1x1xf32, #tpu.memory_space<vmem>>, vector<1x1xf32>
      tpu.vector_store %arg3[%c0_11, %c0_12], %18 {strides = array<i32>} : memref<1x1xf32, #tpu.memory_space<vmem>>, vector<1x1xf32>,
    } else {
    }
    %c0 = arith.constant 0 : index
    %c0_1 = arith.constant 0 : index
    %3 = vector.load %arg2[%c0, %c0_1] : memref<1x128xf32, #tpu.memory_space<vmem>>, vector<1x128xf32>
    %c0_2 = arith.constant 0 : index
    %c0_3 = arith.constant 0 : index
    %4 = vector.load %arg1[%c0_2, %c0_3] : memref<1x128xf32, #tpu.memory_space<vmem>>, vector<1x128xf32>
    %5 = arith.subf %3, %4 : vector<1x128xf32>
    %6 = arith.mulf %5, %5 : vector<1x128xf32>
    %c0_4 = arith.constant 0 : index
    %c0_5 = arith.constant 0 : index
    %7 = vector.load %arg3[%c0_4, %c0_5] : memref<1x1xf32, #tpu.memory_space<vmem>>, vector<1x1xf32>
    %8 = vector.shape_cast %6 : vector<1x128xf32> to vector<1x1x128xf32>
    %cst = arith.constant dense<0.000000e+00> : vector<1xf32>
    %9 = vector.multi_reduction <add>, %8, %cst [1, 2] : vector<1x1x128xf32> to vector<1xf32>
    %10 = vector.shape_cast %9 : vector<1xf32> to vector<1x1x1xf32>
    %11 = vector.extract %10[0, 0, 0] : f32 from vector<1x1x1xf32>
    %12 = vector.broadcast %11 : f32 to vector<1x1xf32>
    %13 = arith.addf %7, %12 : vector<1x1xf32>
    %c0_6 = arith.constant 0 : index
    %c0_7 = arith.constant 0 : index
    %14 = vector.load %arg3[%c0_6, %c0_7] : memref<1x1xf32, #tpu.memory_space<vmem>>, vector<1x1xf32>
    tpu.vector_store %arg3[%c0_6, %c0_7], %13 {strides = array<i32>} : memref<1x1xf32, #tpu.memory_space<vmem>>, vector<1x1xf32>,
    %c0_i32_8 = arith.constant 0 : i32
    %15 = arith.cmpi eq, %arg0, %c0_i32_8 : i32
    %16 = arith.extui %15 : i1 to i32
    %c0_i32_9 = arith.constant 0 : i32
    %17 = arith.cmpi ne, %16, %c0_i32_9 : i32
    scf.if %17 {
      %c0_10 = arith.constant 0 : index
      %c0_11 = arith.constant 0 : index
      %18 = vector.load %arg3[%c0_10, %c0_11] : memref<1x1xf32, #tpu.memory_space<vmem>>, vector<1x1xf32>
      %cst_12 = arith.constant 2.500000e-02 : f32
      %19 = vector.broadcast %cst_12 : f32 to vector<1x1xf32>
      %20 = arith.mulf %18, %19 : vector<1x1xf32>
      %c0_13 = arith.constant 0 : index
      %c0_14 = arith.constant 0 : index
      %21 = vector.load %arg3[%c0_13, %c0_14] : memref<1x1xf32, #tpu.memory_space<vmem>>, vector<1x1xf32>
      tpu.vector_store %arg3[%c0_13, %c0_14], %20 {strides = array<i32>} : memref<1x1xf32, #tpu.memory_space<vmem>>, vector<1x1xf32>,
    } else {
    }
    return
  }
  func.func @transform_0(%arg0: i32) -> (i32, i32) {
    %c0_i32 = arith.constant 0 : i32
    %c0_i32_0 = arith.constant 0 : i32
    return %arg0, %c0_i32 : i32, i32
  }
  func.func @transform_1(%arg0: i32) -> (i32, i32) {
    %c0_i32 = arith.constant 0 : i32
    %c0_i32_0 = arith.constant 0 : i32
    return %arg0, %c0_i32 : i32, i32
  }
  func.func @transform_2(%arg0: i32) -> (i32, i32) {
    %c0_i32 = arith.constant 0 : i32
    %c0_i32_0 = arith.constant 0 : i32
    %c0_i32_1 = arith.constant 0 : i32
    return %c0_i32, %c0_i32_0 : i32, i32
  }
}

</mosaic_0001>

<llo_original>
// kernel: tpu_custom_call.1
$region0: #{tpu_custom_call.1}
  #allocation0 [shape = 'u32[]', space=smem, size = 0x4, offset = 0x4, fixed_abs, tag = 'smem constant byte address 0x4 - core index']
  #allocation1 [shape = 'u32[144,128]{1,0:T(1,128)}', space=vmem, size = 0x12000, scoped, tag = 'internal scratch']
  %s0 = inlined_call_operand.hbm [shape: f32[1,128], index: 0, kind: input, shape index: {}]
  %s1 = inlined_call_operand.vmem [shape: f32[1,128], index: 1, kind: input, shape index: {}]
  %s2 = inlined_call_operand.hbm [shape: f32[1,1], index: 2, kind: output, shape index: {}]
  %s3 = sld [smem:[#allocation0]]
  $region30: #{tpu_custom_call.1} parent=0
    _
  %s5 = ssub.s32 1, %s3
  %s6 = scalar_select 0, %s5, %s3
  $region1: #{tpu_custom_call.1} parent=0
    #allocation2 [shape = 'u8[512]{0}', space=vmem, size = 0x400, scoped, tag = 'input window, operand 0, single buffered']
    #allocation3 [shape = 's32[1]{0}', space=sflag, size = 0x4, scoped, tag = 'scoped memory for tpu_custom_call.1']
    #allocation4 [shape = 's32[1]{0}', space=sflag, size = 0x4, scoped, tag = 'scoped memory for tpu_custom_call.1']
    #allocation5 [shape = 'u8[512]{0}', space=vmem, size = 0x400, scoped, tag = 'output window, operand 0, single buffered']
    %7 = vsyncpa [#allocation3], 0
    %8 = vsyncpa [#allocation4], 0
    // Predicated region
    $region2: #{tpu_custom_call.1} parent=1 // pred_check
      _
    $region3: #{tpu_custom_call.1} parent=1 // pred_check_branch
      %10 = sbr.rel (0) target = $region5
    $region4: #{tpu_custom_call.1} parent=1 // pred_region
      %s12 = ssub.s32 16, 16
      %13 = vsyncadd [#allocation3], %s12
      %s15 = sshll.u32 [#allocation2], 4
      %s16 = int_to_ptr.vmem [resolvable:$true] %s15
      %18 = dma.hbm_to_vmem [thread:$0]  %s0, 16, %s16, [#allocation3]
    $region5: #{tpu_custom_call.1} parent=1 // pred_fallthru
      _
    // Predicated region
    $region6: #{tpu_custom_call.1} parent=1 // pred_check
      _
    $region7: #{tpu_custom_call.1} parent=1 // pred_check_branch
      %20 = sbr.rel (0) target = $region9
    $region8: #{tpu_custom_call.1} parent=1 // pred_region
      _
    $region9: #{tpu_custom_call.1} parent=1 // pred_fallthru
      _
    // Predicated region
    $region10: #{tpu_custom_call.1} parent=1 // pred_check
      _
    $region11: #{tpu_custom_call.1} parent=1 // pred_check_branch
      %22 = sbr.rel (0) target = $region13
    $region12: #{tpu_custom_call.1} parent=1 // pred_region
      %23 = dma.done [#allocation3], 16
    $region13: #{tpu_custom_call.1} parent=1 // pred_fallthru
      _
    %p24 = scmp.eq.s32.totalorder 0, 0
    // Predicated region
    $region14: #{tpu_custom_call.1} parent=1 // pred_check
      %p25 = pneg %p24
    $region15: #{tpu_custom_call.1} parent=1 // pred_check_branch
      %27 = sbr.rel (%p25) target = $region17
    $region16: #{tpu_custom_call.1} parent=1 // pred_region
      %vm28 = vcmask 0
      %29 = vst.msk [vmem:[#allocation5] sm:$0x1] %vm28, 0.0
    $region17: #{tpu_custom_call.1} parent=1 // pred_fallthru
      _
    %v30 = vld [vmem:[%s1] sm:$0x1]
    %v31 = vld [vmem:[#allocation2] sm:$0x1]
    %v32 = vsub.f32 %v30, %v31
    %v33 = vmul.f32 %v32, %v32
    %v34 = vld [vmem:[#allocation5] sm:$0x1]
    %vm35 = vcmask 1040384
    %v36 = vsel %vm35, %v33, 0.0
    %37 = vadd.xlane.f32.xlu0 %v36
    %v38 = vpop.xlane.xlu0 %37
    %v39 = vrot.slane %v38, 4
    %v40 = vadd.f32 %v38, %v39
    %v41 = vrot.slane %v40, 2
    %v42 = vadd.f32 %v40, %v41
    %v43 = vrot.slane %v42, 1
    %v44 = vadd.f32 %v42, %v43
    %s45 = vtos %v44
    %v46 = vstv %s45
    %v47 = vadd.f32 %v34, %v46
    %vm48 = vcmask 0
    %49 = vst.msk [vmem:[#allocation5] sm:$0x1] %vm48, %v47
    // Predicated region
    $region18: #{tpu_custom_call.1} parent=1 // pred_check
      %p50 = pneg %p24
    $region19: #{tpu_custom_call.1} parent=1 // pred_check_branch
      %52 = sbr.rel (%p50) target = $region21
    $region20: #{tpu_custom_call.1} parent=1 // pred_region
      %v53 = vld [vmem:[#allocation5] sm:$0x1]
      %v54 = vmul.f32 %v53, 0.025
      %55 = vst.msk [vmem:[#allocation5] sm:$0x1] %vm48, %v54
    $region21: #{tpu_custom_call.1} parent=1 // pred_fallthru
      _
    // Predicated region
    $region22: #{tpu_custom_call.1} parent=1 // pred_check
      _
    $region23: #{tpu_custom_call.1} parent=1 // pred_check_branch
      %57 = sbr.rel (0) target = $region25
    $region24: #{tpu_custom_call.1} parent=1 // pred_region
      %s59 = ssub.s32 16, 16
      %60 = vsyncadd [#allocation4], %s59
      %s62 = sshll.u32 [#allocation5], 4
      %s63 = int_to_ptr.vmem [resolvable:$true] %s62
      %65 = dma.vmem_to_hbm [thread:$0]  %s63, 16, %s2, [#allocation4]
    $region25: #{tpu_custom_call.1} parent=1 // pred_fallthru
      _
    // Predicated region
    $region26: #{tpu_custom_call.1} parent=1 // pred_check
      _
    $region27: #{tpu_custom_call.1} parent=1 // pred_check_branch
      %67 = sbr.rel (0) target = $region29
    $region28: #{tpu_custom_call.1} parent=1 // pred_region
      %68 = dma.done [#allocation4], 16
    $region29: #{tpu_custom_call.1} parent=1 // pred_fallthru
      _
    %69 = vsyncpa [#allocation3], 1
    %70 = vsyncpa [#allocation4], 1

</llo_original>
